<compile_context>
chip_gen: v6e
topology: v6e:2x2x1
jax: 0.10.0
libtpu: 0.0.40
codegen_flags: <defaults>
</compile_context>

<pallas_src>
import jax
import jax.numpy as jnp
from jax.experimental import pallas as pl
from jax.experimental.pallas import tpu as pltpu

LANES = 128
SUBLANES = 8
_TR_CAP = 2048          # max 128-token rows per grid step


def _biaffine_span_metrics_kernel(logits_ref, labels_ref,
                                  corr_ref, true_ref, pred_ref):
    # logits_ref: (C, TR, 128) native dtype
    # labels_ref: (TR, 128)    integer
    # corr/true/pred_ref: (1, 8, 128) f32 per-core partial-sum accumulators
    k = pl.program_id(1)

    @pl.when(k == 0)
    def _init():
        corr_ref[...] = jnp.zeros_like(corr_ref)
        true_ref[...] = jnp.zeros_like(true_ref)
        pred_ref[...] = jnp.zeros_like(pred_ref)

    n_classes = logits_ref.shape[0]
    # Native-dtype compares for f32/bf16 (VPU handles both on v6e/v7x; Mosaic
    # widens internally where needed); upcast anything else to f32.
    native_cmp = logits_ref.dtype in (jnp.float32, jnp.bfloat16)

    def _load(c):
        v = logits_ref[c]
        return v if native_cmp else v.astype(jnp.float32)

    # Unrolled running argmax over the small static class axis: pure
    # elementwise VPU compares/selects.  Strict '>' keeps the first maximal
    # index (torch/jnp argmax tie-break).  NaN logits never win (IEEE
    # compares); finite logits assumed.
    best_val = _load(0)                                    # (TR, 128)
    best_idx = jnp.zeros(best_val.shape, jnp.int32)
    for c in range(1, n_classes):
        v = _load(c)
        take = v > best_val
        best_val = jnp.where(take, v, best_val)
        best_idx = jnp.where(take, jnp.int32(c), best_idx)

    labels = labels_ref[...].astype(jnp.int32)             # (TR, 128)

    one = jnp.float32(1.0)
    zero = jnp.float32(0.0)
    y_pred = jnp.where(best_idx >= 1, one, zero)
    y_true = jnp.where(labels >= 1, one, zero)
    corr = jnp.where(best_idx == labels, y_true, zero)

    # Fold (TR, 128) -> (1, 8, 128): sublane-aligned reshape + cross-vreg adds
    # (pure VALU, no XLU); keeps per-step accumulator traffic at one tile.
    def _fold(x):
        return x.reshape(-1, SUBLANES, LANES).sum(axis=0, keepdims=True)

    corr_ref[...] += _fold(corr)
    true_ref[...] += _fold(y_true)
    pred_ref[...] += _fold(y_pred)


def biaffine_span_metrics(logits, labels, *, rows_per_tile=None,
                          num_parallel=2, class_leading=False):
    """BiaffineSpanMetrics forward.

    logits: (B, S, H, C), or (C, B, S, H) if class_leading=True (avoids the
            wrapper-side transpose pass over the dominant tensor).
    labels: (B, S, H) integer.
    Returns (recall, precision, f1) as f32 scalars.
    """
    if class_leading:
        C = logits.shape[0]
        assert logits.shape[1:] == labels.shape
        lg = logits.reshape(C, -1)                         # (C, N), no copy
    else:
        assert logits.shape[:-1] == labels.shape
        C = logits.shape[-1]
        # TODO(synk): one extra HBM pass over logits; prefer class_leading=True
        # from the producer (or CompilerParams(allow_input_fusion=...)) to
        # remove it for bandwidth-bound end-to-end runs.
        lg = jnp.moveaxis(logits.reshape(-1, C), 1, 0)     # (C, N)
    N = labels.size
    lb = labels.reshape(-1)

    R = pl.cdiv(N, LANES)                                  # 128-token rows
    P = max(1, int(num_parallel))                          # megacore axis (v7x)

    # --- tile sizing from the per-chip VMEM budget ---------------------------
    logit_bytes = logits.dtype.itemsize
    label_bytes = labels.dtype.itemsize
    try:
        vmem_cap = int(pltpu.get_tpu_info().vmem_capacity_bytes)
    except Exception:
        vmem_cap = 64 * 1024 * 1024                        # v7x-safe fallback
    budget = min(vmem_cap // 2, 40 * 1024 * 1024)
    # double-buffered input blocks, bytes per 128-token row
    bytes_per_row = 2 * LANES * (C * logit_bytes + label_bytes)
    tr = max(SUBLANES, min(_TR_CAP, budget // bytes_per_row))
    tr = (tr // SUBLANES) * SUBLANES
    if rows_per_tile is not None:
        tr = max(SUBLANES, (int(rows_per_tile) // SUBLANES) * SUBLANES)
    # never take a tile larger than the work available per core
    tr_need = pl.cdiv(pl.cdiv(R, P), SUBLANES) * SUBLANES
    tr = min(tr, tr_need)

    n_k = pl.cdiv(R, P * tr)                               # reduction steps/core
    r_pad = P * n_k * tr
    n_pad = r_pad * LANES
    if n_pad != N:
        # Zero padding is inert for all three sums (see header comment).
        lg = jnp.pad(lg, ((0, 0), (0, n_pad - N)))
        lb = jnp.pad(lb, (0, n_pad - N))
    lg = lg.reshape(C, r_pad, LANES)
    lb = lb.reshape(r_pad, LANES)

    used = bytes_per_row * tr + 3 * 2 * SUBLANES * LANES * 4
    vmem_limit = int(min(max(2 * used, 32 * 1024 * 1024), vmem_cap))

    part_shape = jax.ShapeDtypeStruct((P, SUBLANES, LANES), jnp.float32)
    part_spec = pl.BlockSpec((1, SUBLANES, LANES), lambda p, k: (p, 0, 0))

    corr_p, true_p, pred_p = pl.pallas_call(
        _biaffine_span_metrics_kernel,
        out_shape=(part_shape, part_shape, part_shape),
        grid_spec=pltpu.PrefetchScalarGridSpec(
            num_scalar_prefetch=0,
            grid=(P, n_k),
            in_specs=[
                pl.BlockSpec((C, tr, LANES), lambda p, k: (0, p * n_k + k, 0)),
                pl.BlockSpec((tr, LANES), lambda p, k: (p * n_k + k, 0)),
            ],
            out_specs=[part_spec, part_spec, part_spec],
        ),
        compiler_params=pltpu.CompilerParams(
            # leading axis shards row-tiles across TensorCores (v7x megacore);
            # trailing axis is the in-core accumulation loop.
            dimension_semantics=("parallel", "arbitrary"),
            vmem_limit_bytes=vmem_limit,
        ),
    )(lg, lb)

    # Final reduce + divides are trivial XLA ops on (P,8,128) partials.
    # (f32 totals are exact up to 2^24 tokens; metric rounding beyond that is
    # negligible.)
    corr_sum = jnp.sum(corr_p)
    true_sum = jnp.sum(true_p)
    pred_sum = jnp.sum(pred_p)
    eps = jnp.float32(1e-8)
    recall = corr_sum / (true_sum + eps)
    precision = corr_sum / (pred_sum + eps)
    f1 = 2.0 * recall * precision / (recall + precision + eps)
    return recall, precision, f1


def _reference(logits, labels):
    pred = jnp.argmax(logits, axis=-1).reshape(-1).astype(jnp.float32)
    lab = labels.reshape(-1).astype(jnp.float32)
    y_pred = jnp.where(pred < 1, 0.0, 1.0)
    y_true = jnp.where(lab < 1, 0.0, 1.0)
    corr = (pred == lab).astype(jnp.float32) * y_true
    recall = jnp.sum(corr) / (jnp.sum(y_true) + 1e-8)
    precision = jnp.sum(corr) / (jnp.sum(y_pred) + 1e-8)
    f1 = 2 * recall * precision / (recall + precision + 1e-8)
    return recall, precision, f1


if __name__ == "__main__":
    key = jax.random.PRNGKey(0)
    k1, k2, k3, k4 = jax.random.split(key, 4)

    # Biaffine-span-style small shapes: batch=2, seq=31, span-end dim=30,
    # 5 span-label classes (N=1860 tokens -> exercises padding + parallel axis).
    B, S, H, C = 2, 31, 30, 5
    logits = jax.random.normal(k1, (B, S, H, C), dtype=jnp.float32)
    labels = jax.random.randint(k2, (B, S, H), minval=0, maxval=C, dtype=jnp.int32)

    out = biaffine_span_metrics(logits, labels)
    jax.block_until_ready(out)
    ref = _reference(logits, labels)
    for a, b in zip(out, ref):
        assert jnp.allclose(a, b, atol=1e-5), (a, b)

    # Second config: forces a multi-step accumulating grid (tiny tiles) and
    # exercises the class-leading (no-transpose) input path.
    B2, S2, H2, C2 = 2, 48, 40, 7
    logits2 = jax.random.normal(k3, (C2, B2, S2, H2), dtype=jnp.float32)
    labels2 = jax.random.randint(k4, (B2, S2, H2), minval=0, maxval=C2,
                                 dtype=jnp.int32)
    out2 = biaffine_span_metrics(logits2, labels2, rows_per_tile=8,
                                 class_leading=True)
    jax.block_until_ready(out2)
    ref2 = _reference(jnp.moveaxis(logits2, 0, -1), labels2)
    for a, b in zip(out2, ref2):
        assert jnp.allclose(a, b, atol=1e-5), (a, b)

    print("KERNEL_OK")
</pallas_src>

<mosaic_0001>
module attributes {stable_mosaic.version = 11 : i64} {
  func.func @_biaffine_span_metrics_kernel(%arg0: i32, %arg1: i32, %arg2: memref<5x8x128xf32, #tpu.memory_space<vmem>>, %arg3: memref<8x128xi32, #tpu.memory_space<vmem>>, %arg4: memref<1x8x128xf32, #tpu.memory_space<vmem>>, %arg5: memref<1x8x128xf32, #tpu.memory_space<vmem>>, %arg6: memref<1x8x128xf32, #tpu.memory_space<vmem>>) attributes {dimension_semantics = [#tpu.dimension_semantics<parallel>, #tpu.dimension_semantics<arbitrary>], iteration_bounds = array<i64: 2, 1>, scalar_prefetch = 0 : i64, scratch_operands = 0 : i64, tpu.core_type = #tpu.core_type<tc>, window_params = [{transform_indices = @transform_0, window_bounds = array<i64: 5, 8, 128>}, {transform_indices = @transform_1, window_bounds = array<i64: 8, 128>}, {transform_indices = @transform_2, window_bounds = array<i64: 1, 8, 128>}, {transform_indices = @transform_3, window_bounds = array<i64: 1, 8, 128>}, {transform_indices = @transform_4, window_bounds = array<i64: 1, 8, 128>}]} {
    %c0_i32 = arith.constant 0 : i32
    %0 = arith.cmpi eq, %arg1, %c0_i32 : i32
    %1 = arith.extui %0 : i1 to i32
    %c0_i32_0 = arith.constant 0 : i32
    %2 = arith.cmpi ne, %1, %c0_i32_0 : i32
    scf.if %2 {
      %cst_41 = arith.constant 0.000000e+00 : f32
      %61 = vector.broadcast %cst_41 : f32 to vector<1x8x128xf32>
      %c0_42 = arith.constant 0 : index
      %c0_43 = arith.constant 0 : index
      %c0_44 = arith.constant 0 : index
      %62 = vector.load %arg4[%c0_42, %c0_43, %c0_44] : memref<1x8x128xf32, #tpu.memory_space<vmem>>, vector<1x8x128xf32>
      tpu.vector_store %arg4[%c0_42, %c0_43, %c0_44], %61 {strides = array<i32>} : memref<1x8x128xf32, #tpu.memory_space<vmem>>, vector<1x8x128xf32>,
      %cst_45 = arith.constant 0.000000e+00 : f32
      %63 = vector.broadcast %cst_45 : f32 to vector<1x8x128xf32>
      %c0_46 = arith.constant 0 : index
      %c0_47 = arith.constant 0 : index
      %c0_48 = arith.constant 0 : index
      %64 = vector.load %arg5[%c0_46, %c0_47, %c0_48] : memref<1x8x128xf32, #tpu.memory_space<vmem>>, vector<1x8x128xf32>
      tpu.vector_store %arg5[%c0_46, %c0_47, %c0_48], %63 {strides = array<i32>} : memref<1x8x128xf32, #tpu.memory_space<vmem>>, vector<1x8x128xf32>,
      %cst_49 = arith.constant 0.000000e+00 : f32
      %65 = vector.broadcast %cst_49 : f32 to vector<1x8x128xf32>
      %c0_50 = arith.constant 0 : index
      %c0_51 = arith.constant 0 : index
      %c0_52 = arith.constant 0 : index
      %66 = vector.load %arg6[%c0_50, %c0_51, %c0_52] : memref<1x8x128xf32, #tpu.memory_space<vmem>>, vector<1x8x128xf32>
      tpu.vector_store %arg6[%c0_50, %c0_51, %c0_52], %65 {strides = array<i32>} : memref<1x8x128xf32, #tpu.memory_space<vmem>>, vector<1x8x128xf32>,
    } else {
    }
    %c0 = arith.constant 0 : index
    %c0_1 = arith.constant 0 : index
    %c0_2 = arith.constant 0 : index
    %3 = vector.load %arg2[%c0, %c0_1, %c0_2] : memref<5x8x128xf32, #tpu.memory_space<vmem>>, vector<1x8x128xf32>
    %4 = vector.shape_cast %3 : vector<1x8x128xf32> to vector<8x128xf32>
    %c0_i32_3 = arith.constant 0 : i32
    %5 = vector.broadcast %c0_i32_3 : i32 to vector<8x128xi32>
    %c1 = arith.constant 1 : index
    %c0_4 = arith.constant 0 : index
    %c0_5 = arith.constant 0 : index
    %6 = vector.load %arg2[%c1, %c0_4, %c0_5] : memref<5x8x128xf32, #tpu.memory_space<vmem>>, vector<1x8x128xf32>
    %7 = vector.shape_cast %6 : vector<1x8x128xf32> to vector<8x128xf32>
    %8 = arith.cmpf ogt, %7, %4 : vector<8x128xf32>
    %9 = arith.select %8, %7, %4 : vector<8x128xi1>, vector<8x128xf32>
    %c1_i32 = arith.constant 1 : i32
    %10 = vector.broadcast %c1_i32 : i32 to vector<8x128xi32>
    %11 = arith.select %8, %10, %5 : vector<8x128xi1>, vector<8x128xi32>
    %c2 = arith.constant 2 : index
    %c0_6 = arith.constant 0 : index
    %c0_7 = arith.constant 0 : index
    %12 = vector.load %arg2[%c2, %c0_6, %c0_7] : memref<5x8x128xf32, #tpu.memory_space<vmem>>, vector<1x8x128xf32>
    %13 = vector.shape_cast %12 : vector<1x8x128xf32> to vector<8x128xf32>
    %14 = arith.cmpf ogt, %13, %9 : vector<8x128xf32>
    %15 = arith.select %14, %13, %9 : vector<8x128xi1>, vector<8x128xf32>
    %c2_i32 = arith.constant 2 : i32
    %16 = vector.broadcast %c2_i32 : i32 to vector<8x128xi32>
    %17 = arith.select %14, %16, %11 : vector<8x128xi1>, vector<8x128xi32>
    %c3 = arith.constant 3 : index
    %c0_8 = arith.constant 0 : index
    %c0_9 = arith.constant 0 : index
    %18 = vector.load %arg2[%c3, %c0_8, %c0_9] : memref<5x8x128xf32, #tpu.memory_space<vmem>>, vector<1x8x128xf32>
    %19 = vector.shape_cast %18 : vector<1x8x128xf32> to vector<8x128xf32>
    %20 = arith.cmpf ogt, %19, %15 : vector<8x128xf32>
    %21 = arith.select %20, %19, %15 : vector<8x128xi1>, vector<8x128xf32>
    %c3_i32 = arith.constant 3 : i32
    %22 = vector.broadcast %c3_i32 : i32 to vector<8x128xi32>
    %23 = arith.select %20, %22, %17 : vector<8x128xi1>, vector<8x128xi32>
    %c4 = arith.constant 4 : index
    %c0_10 = arith.constant 0 : index
    %c0_11 = arith.constant 0 : index
    %24 = vector.load %arg2[%c4, %c0_10, %c0_11] : memref<5x8x128xf32, #tpu.memory_space<vmem>>, vector<1x8x128xf32>
    %25 = vector.shape_cast %24 : vector<1x8x128xf32> to vector<8x128xf32>
    %26 = arith.cmpf ogt, %25, %21 : vector<8x128xf32>
    %c4_i32 = arith.constant 4 : i32
    %27 = vector.broadcast %c4_i32 : i32 to vector<8x128xi32>
    %28 = arith.select %26, %27, %23 : vector<8x128xi1>, vector<8x128xi32>
    %c0_12 = arith.constant 0 : index
    %c0_13 = arith.constant 0 : index
    %29 = vector.load %arg3[%c0_12, %c0_13] : memref<8x128xi32, #tpu.memory_space<vmem>>, vector<8x128xi32>
    %c1_i32_14 = arith.constant 1 : i32
    %30 = vector.broadcast %c1_i32_14 : i32 to vector<8x128xi32>
    %31 = arith.cmpi sge, %28, %30 : vector<8x128xi32>
    %cst = arith.constant 1.000000e+00 : f32
    %cst_15 = arith.constant 0.000000e+00 : f32
    %32 = vector.broadcast %cst : f32 to vector<8x128xf32>
    %33 = vector.broadcast %cst_15 : f32 to vector<8x128xf32>
    %34 = arith.select %31, %32, %33 : vector<8x128xi1>, vector<8x128xf32>
    %c1_i32_16 = arith.constant 1 : i32
    %35 = vector.broadcast %c1_i32_16 : i32 to vector<8x128xi32>
    %36 = arith.cmpi sge, %29, %35 : vector<8x128xi32>
    %cst_17 = arith.constant 1.000000e+00 : f32
    %cst_18 = arith.constant 0.000000e+00 : f32
    %37 = vector.broadcast %cst_17 : f32 to vector<8x128xf32>
    %38 = vector.broadcast %cst_18 : f32 to vector<8x128xf32>
    %39 = arith.select %36, %37, %38 : vector<8x128xi1>, vector<8x128xf32>
    %40 = arith.cmpi eq, %28, %29 : vector<8x128xi32>
    %cst_19 = arith.constant 0.000000e+00 : f32
    %41 = vector.broadcast %cst_19 : f32 to vector<8x128xf32>
    %42 = arith.select %40, %39, %41 : vector<8x128xi1>, vector<8x128xf32>
    %c0_20 = arith.constant 0 : index
    %c0_21 = arith.constant 0 : index
    %c0_22 = arith.constant 0 : index
    %43 = vector.load %arg4[%c0_20, %c0_21, %c0_22] : memref<1x8x128xf32, #tpu.memory_space<vmem>>, vector<1x8x128xf32>
    %44 = vector.shape_cast %42 : vector<8x128xf32> to vector<1x8x128xf32>
    %cst_23 = arith.constant dense<0.000000e+00> : vector<8x128xf32>
    %45 = vector.multi_reduction <add>, %44, %cst_23 [0] : vector<1x8x128xf32> to vector<8x128xf32>
    %46 = vector.shape_cast %45 : vector<8x128xf32> to vector<1x8x128xf32>
    %47 = arith.addf %43, %46 : vector<1x8x128xf32>
    %c0_24 = arith.constant 0 : index
    %c0_25 = arith.constant 0 : index
    %c0_26 = arith.constant 0 : index
    %48 = vector.load %arg4[%c0_24, %c0_25, %c0_26] : memref<1x8x128xf32, #tpu.memory_space<vmem>>, vector<1x8x128xf32>
    tpu.vector_store %arg4[%c0_24, %c0_25, %c0_26], %47 {strides = array<i32>} : memref<1x8x128xf32, #tpu.memory_space<vmem>>, vector<1x8x128xf32>,
    %c0_27 = arith.constant 0 : index
    %c0_28 = arith.constant 0 : index
    %c0_29 = arith.constant 0 : index
    %49 = vector.load %arg5[%c0_27, %c0_28, %c0_29] : memref<1x8x128xf32, #tpu.memory_space<vmem>>, vector<1x8x128xf32>
    %50 = vector.shape_cast %39 : vector<8x128xf32> to vector<1x8x128xf32>
    %cst_30 = arith.constant dense<0.000000e+00> : vector<8x128xf32>
    %51 = vector.multi_reduction <add>, %50, %cst_30 [0] : vector<1x8x128xf32> to vector<8x128xf32>
    %52 = vector.shape_cast %51 : vector<8x128xf32> to vector<1x8x128xf32>
    %53 = arith.addf %49, %52 : vector<1x8x128xf32>
    %c0_31 = arith.constant 0 : index
    %c0_32 = arith.constant 0 : index
    %c0_33 = arith.constant 0 : index
    %54 = vector.load %arg5[%c0_31, %c0_32, %c0_33] : memref<1x8x128xf32, #tpu.memory_space<vmem>>, vector<1x8x128xf32>
    tpu.vector_store %arg5[%c0_31, %c0_32, %c0_33], %53 {strides = array<i32>} : memref<1x8x128xf32, #tpu.memory_space<vmem>>, vector<1x8x128xf32>,
    %c0_34 = arith.constant 0 : index
    %c0_35 = arith.constant 0 : index
    %c0_36 = arith.constant 0 : index
    %55 = vector.load %arg6[%c0_34, %c0_35, %c0_36] : memref<1x8x128xf32, #tpu.memory_space<vmem>>, vector<1x8x128xf32>
    %56 = vector.shape_cast %34 : vector<8x128xf32> to vector<1x8x128xf32>
    %cst_37 = arith.constant dense<0.000000e+00> : vector<8x128xf32>
    %57 = vector.multi_reduction <add>, %56, %cst_37 [0] : vector<1x8x128xf32> to vector<8x128xf32>
    %58 = vector.shape_cast %57 : vector<8x128xf32> to vector<1x8x128xf32>
    %59 = arith.addf %55, %58 : vector<1x8x128xf32>
    %c0_38 = arith.constant 0 : index
    %c0_39 = arith.constant 0 : index
    %c0_40 = arith.constant 0 : index
    %60 = vector.load %arg6[%c0_38, %c0_39, %c0_40] : memref<1x8x128xf32, #tpu.memory_space<vmem>>, vector<1x8x128xf32>
    tpu.vector_store %arg6[%c0_38, %c0_39, %c0_40], %59 {strides = array<i32>} : memref<1x8x128xf32, #tpu.memory_space<vmem>>, vector<1x8x128xf32>,
    return
  }
  func.func @transform_0(%arg0: i32, %arg1: i32) -> (i32, i32, i32) {
    %c1_i32 = arith.constant 1 : i32
    %0 = arith.muli %arg0, %c1_i32 : i32
    %1 = arith.addi %0, %arg1 : i32
    %c0_i32 = arith.constant 0 : i32
    %c0_i32_0 = arith.constant 0 : i32
    %c0_i32_1 = arith.constant 0 : i32
    return %c0_i32, %1, %c0_i32_0 : i32, i32, i32
  }
  func.func @transform_1(%arg0: i32, %arg1: i32) -> (i32, i32) {
    %c1_i32 = arith.constant 1 : i32
    %0 = arith.muli %arg0, %c1_i32 : i32
    %1 = arith.addi %0, %arg1 : i32
    %c0_i32 = arith.constant 0 : i32
    %c0_i32_0 = arith.constant 0 : i32
    return %1, %c0_i32 : i32, i32
  }
  func.func @transform_2(%arg0: i32, %arg1: i32) -> (i32, i32, i32) {
    %c0_i32 = arith.constant 0 : i32
    %c0_i32_0 = arith.constant 0 : i32
    %c0_i32_1 = arith.constant 0 : i32
    return %arg0, %c0_i32, %c0_i32_0 : i32, i32, i32
  }
  func.func @transform_3(%arg0: i32, %arg1: i32) -> (i32, i32, i32) {
    %c0_i32 = arith.constant 0 : i32
    %c0_i32_0 = arith.constant 0 : i32
    %c0_i32_1 = arith.constant 0 : i32
    return %arg0, %c0_i32, %c0_i32_0 : i32, i32, i32
  }
  func.func @transform_4(%arg0: i32, %arg1: i32) -> (i32, i32, i32) {
    %c0_i32 = arith.constant 0 : i32
    %c0_i32_0 = arith.constant 0 : i32
    %c0_i32_1 = arith.constant 0 : i32
    return %arg0, %c0_i32, %c0_i32_0 : i32, i32, i32
  }
}

</mosaic_0001>

<llo_original>
// kernel: tpu_custom_call.1
$region0: #{tpu_custom_call.1}
  #allocation0 [shape = 'u32[]', space=smem, size = 0x4, offset = 0x4, fixed_abs, tag = 'smem constant byte address 0x4 - core index']
  #allocation1 [shape = 'u32[144,128]{1,0:T(1,128)}', space=vmem, size = 0x12000, scoped, tag = 'internal scratch']
  %s0 = inlined_call_operand.hbm [shape: f32[5,16,128], index: 0, kind: input, shape index: {}]
  %s1 = inlined_call_operand.hbm [shape: s32[16,128], index: 1, kind: input, shape index: {}]
  %s2 = inlined_call_operand.hbm [shape: f32[2,8,128], index: 2, kind: output, shape index: {0}]
  %s3 = inlined_call_operand.hbm [shape: f32[2,8,128], index: 3, kind: output, shape index: {1}]
  %s4 = inlined_call_operand.hbm [shape: f32[2,8,128], index: 4, kind: output, shape index: {2}]
  %5 = xla_tuple %s2, %s3, %s4
  %s6 = sld [smem:[#allocation0]]
  $region69: #{tpu_custom_call.1} parent=0
    _
  %s8 = ssub.s32 1, %s6
  %s9 = scalar_select 0, %s8, %s6
  $region1: #{tpu_custom_call.1} parent=0
    #allocation2 [shape = 'u8[40960]{0}', space=vmem, size = 0xa000, scoped, tag = 'input window, operand 0']
    #allocation3 [shape = 's32[2]{0}', space=sflag, size = 0x8, scoped, tag = 'scoped memory for tpu_custom_call.1']
    #allocation4 [shape = 's32[2]{0}', space=sflag, size = 0x8, scoped, tag = 'scoped memory for tpu_custom_call.1']
    #allocation5 [shape = 'u8[8192]{0}', space=vmem, size = 0x2000, scoped, tag = 'input window, operand 1']
    #allocation6 [shape = 's32[2]{0}', space=sflag, size = 0x8, scoped, tag = 'scoped memory for tpu_custom_call.1']
    #allocation7 [shape = 'u8[8192]{0}', space=vmem, size = 0x2000, scoped, tag = 'output window, operand 0']
    #allocation8 [shape = 'u8[8192]{0}', space=vmem, size = 0x2000, scoped, tag = 'output window, operand 1']
    #allocation9 [shape = 's32[2]{0}', space=sflag, size = 0x8, scoped, tag = 'scoped memory for tpu_custom_call.1']
    #allocation10 [shape = 'u8[8192]{0}', space=vmem, size = 0x2000, scoped, tag = 'output window, operand 2']
    %10 = vsyncpa [#allocation3], 0
    %s11 = scalar_lea.sflag [#allocation3], 1
    %12 = vsyncpa %s11, 0
    %13 = vsyncpa [#allocation6], 0
    %s14 = scalar_lea.sflag [#allocation6], 1
    %15 = vsyncpa %s14, 0
    %16 = vsyncpa [#allocation4], 0
    %s17 = scalar_lea.sflag [#allocation4], 1
    %18 = vsyncpa %s17, 0
    %19 = vsyncpa [#allocation9], 0
    %s20 = scalar_lea.sflag [#allocation9], 1
    %21 = vsyncpa %s20, 0
    loop: start=0, step=1, limit=4
    $region2: #{tpu_custom_call.1} parent=1 // loop_pre_header
      _
    $region3: #{tpu_custom_call.1} parent=1 // loop_header
      %s23 = sphi 0, %s27
      %p24 = scmp.ge.s32.totalorder %s23, 4
      %s30 = sphi 0, %s42
      %s31 = sphi 0, %s38
      %s32 = sphi 0, %s30
      %s33 = sphi 0, %s31
      %s34 = sphi 0, %s32
      %s35 = sphi 0, %s33
      %s47 = sphi 0, %s49
      %s50 = sphi 0, %s47
      %s51 = sphi 0, %s50
      %s67 = sphi 0, %s51
      %s75 = sphi 0, %s77
      %s78 = sphi 0, %s75
      %s79 = sphi 0, %s78
      %s95 = sphi 0, %s79
      %s101 = sphi 0, %s103
      %s104 = sphi 0, %s101
      %s105 = sphi 0, %s104
      %s121 = sphi 0, %s105
      %s127 = sphi 0, %s129
      %s130 = sphi 0, %s127
      %s131 = sphi 0, %s130
      %s147 = sphi 0, %s131
      %s153 = sphi 0, %s155
      %s156 = sphi 0, %s153
      %s157 = sphi 0, %s156
      %s173 = sphi 0, %s157
    $region4: #{tpu_custom_call.1} parent=1 // loop_header_branch
      %26 = sbr.rel (%p24) target = $region8
    $region5: #{tpu_custom_call.1} parent=1 // loop_body
      %s28 = ssub.s32 %s23, 1
      %s29 = ssub.s32 %s23, 2
      %s36 = sadd.s32 1, %s31
      %p37 = scmp.ge.s32.totalorder %s36, 1
      %s38 = scalar_select %p37, 0, %s36
      %s39 = sadd.s32 1, %s30
      %s40 = scalar_select %p37, %s39, %s30
      %p41 = scmp.ge.s32.totalorder %s40, 2
      %s42 = scalar_select %p41, 0, %s40
      %s43 = sadd.s32 %s30, %s31
      %s44 = sadd.s32 %s42, %s38
      %s45 = ssub.s32 %s43, %s44
      %p46 = scmp.eq.s32.totalorder %s45, 0
      %s48 = sadd.s32 %s47, 1
      %s49 = scalar_select %p46, %s47, %s48
      %p52 = pneg %p46
      %p53 = scmp.eq.s32.totalorder %s23, 1
      %p54 = por %p52, %p53
      %p55 = scmp.ne.s32.totalorder %s47, %s50
      %p56 = scmp.eq.s32.totalorder %s23, 0
      %p57 = por %p55, %p56
      %p58 = scmp.ne.s32.totalorder %s47, %s50
      %p59 = scmp.eq.s32.totalorder %s28, 1
      %p60 = por %p58, %p59
      %p61 = scmp.ne.s32.totalorder %s50, %s51
      %p62 = scmp.eq.s32.totalorder %s28, 0
      %p63 = por %p61, %p62
      %p64 = scmp.ne.s32.totalorder %s50, %s51
      %p65 = scmp.eq.s32.totalorder %s29, 1
      %p66 = por %p64, %p65
      %p68 = scmp.ne.s32.totalorder %s51, %s67
      %p69 = scmp.eq.s32.totalorder %s29, 0
      %p70 = por %p68, %p69
      %s71 = sadd.s32 %s30, %s31
      %s72 = sadd.s32 %s42, %s38
      %s73 = ssub.s32 %s71, %s72
      %p74 = scmp.eq.s32.totalorder %s73, 0
      %s76 = sadd.s32 %s75, 1
      %s77 = scalar_select %p74, %s75, %s76
      %p80 = pneg %p74
      %p81 = scmp.eq.s32.totalorder %s23, 1
      %p82 = por %p80, %p81
      %p83 = scmp.ne.s32.totalorder %s75, %s78
      %p84 = scmp.eq.s32.totalorder %s23, 0
      %p85 = por %p83, %p84
      %p86 = scmp.ne.s32.totalorder %s75, %s78
      %p87 = scmp.eq.s32.totalorder %s28, 1
      %p88 = por %p86, %p87
      %p89 = scmp.ne.s32.totalorder %s78, %s79
      %p90 = scmp.eq.s32.totalorder %s28, 0
      %p91 = por %p89, %p90
      %p92 = scmp.ne.s32.totalorder %s78, %s79
      %p93 = scmp.eq.s32.totalorder %s29, 1
      %p94 = por %p92, %p93
      %p96 = scmp.ne.s32.totalorder %s79, %s95
      %p97 = scmp.eq.s32.totalorder %s29, 0
      %p98 = por %p96, %p97
      %s99 = ssub.s32 %s30, %s42
      %p100 = scmp.eq.s32.totalorder %s99, 0
      %s102 = sadd.s32 %s101, 1
      %s103 = scalar_select %p100, %s101, %s102
      %p106 = pneg %p100
      %p107 = scmp.eq.s32.totalorder %s23, 1
      %p108 = por %p106, %p107
      %p109 = scmp.ne.s32.totalorder %s101, %s104
      %p110 = scmp.eq.s32.totalorder %s23, 0
      %p111 = por %p109, %p110
      %p112 = scmp.ne.s32.totalorder %s101, %s104
      %p113 = scmp.eq.s32.totalorder %s28, 1
      %p114 = por %p112, %p113
      %p115 = scmp.ne.s32.totalorder %s104, %s105
      %p116 = scmp.eq.s32.totalorder %s28, 0
      %p117 = por %p115, %p116
      %p118 = scmp.ne.s32.totalorder %s104, %s105
      %p119 = scmp.eq.s32.totalorder %s29, 1
      %p120 = por %p118, %p119
      %p122 = scmp.ne.s32.totalorder %s105, %s121
      %p123 = scmp.eq.s32.totalorder %s29, 0
      %p124 = por %p122, %p123
      %s125 = ssub.s32 %s30, %s42
      %p126 = scmp.eq.s32.totalorder %s125, 0
      %s128 = sadd.s32 %s127, 1
      %s129 = scalar_select %p126, %s127, %s128
      %p132 = pneg %p126
      %p133 = scmp.eq.s32.totalorder %s23, 1
      %p134 = por %p132, %p133
      %p135 = scmp.ne.s32.totalorder %s127, %s130
      %p136 = scmp.eq.s32.totalorder %s23, 0
      %p137 = por %p135, %p136
      %p138 = scmp.ne.s32.totalorder %s127, %s130
      %p139 = scmp.eq.s32.totalorder %s28, 1
      %p140 = por %p138, %p139
      %p141 = scmp.ne.s32.totalorder %s130, %s131
      %p142 = scmp.eq.s32.totalorder %s28, 0
      %p143 = por %p141, %p142
      %p144 = scmp.ne.s32.totalorder %s130, %s131
      %p145 = scmp.eq.s32.totalorder %s29, 1
      %p146 = por %p144, %p145
      %p148 = scmp.ne.s32.totalorder %s131, %s147
      %p149 = scmp.eq.s32.totalorder %s29, 0
      %p150 = por %p148, %p149
      %s151 = ssub.s32 %s30, %s42
      %p152 = scmp.eq.s32.totalorder %s151, 0
      %s154 = sadd.s32 %s153, 1
      %s155 = scalar_select %p152, %s153, %s154
      %p158 = pneg %p152
      %p159 = scmp.eq.s32.totalorder %s23, 1
      %p160 = por %p158, %p159
      %p161 = scmp.ne.s32.totalorder %s153, %s156
      %p162 = scmp.eq.s32.totalorder %s23, 0
      %p163 = por %p161, %p162
      %p164 = scmp.ne.s32.totalorder %s153, %s156
      %p165 = scmp.eq.s32.totalorder %s28, 1
      %p166 = por %p164, %p165
      %p167 = scmp.ne.s32.totalorder %s156, %s157
      %p168 = scmp.eq.s32.totalorder %s28, 0
      %p169 = por %p167, %p168
      %p170 = scmp.ne.s32.totalorder %s156, %s157
      %p171 = scmp.eq.s32.totalorder %s29, 1
      %p172 = por %p170, %p171
      %p174 = scmp.ne.s32.totalorder %s157, %s173
      %p175 = scmp.eq.s32.totalorder %s29, 0
      %p176 = por %p174, %p175
      %p177 = scmp.le.s32.totalorder 1, %s23
      %p178 = scmp.lt.s32.totalorder %s23, 3
      %p179 = pnand %p177, %p178
      %p180 = pneg %p179
      // Predicated region
      $region9: #{tpu_custom_call.1} parent=5 // pred_check
        _
      $region10: #{tpu_custom_call.1} parent=5 // pred_check_branch
        %182 = sbr.rel (%p179) target = $region12
      $region11: #{tpu_custom_call.1} parent=5 // pred_region
        %s183 = ssub.s32 %s23, 1
      $region12: #{tpu_custom_call.1} parent=5 // pred_fallthru
        _
      %p184 = scmp.lt.s32.totalorder %s23, 2
      // Predicated region
      $region13: #{tpu_custom_call.1} parent=5 // pred_check
        %p185 = pneg %p184
      $region14: #{tpu_custom_call.1} parent=5 // pred_check_branch
        %187 = sbr.rel (%p185) target = $region16
      $region15: #{tpu_custom_call.1} parent=5 // pred_region
        // Predicated region
        $region17: #{tpu_custom_call.1} parent=15 // pred_check
          %p188 = pneg %p57
        $region18: #{tpu_custom_call.1} parent=15 // pred_check_branch
          %190 = sbr.rel (%p188) target = $region20
        $region19: #{tpu_custom_call.1} parent=15 // pred_region
          %s191 = sand.u32 %s47, 1
          %s192 = scalar_lea.sflag [#allocation3], %s191
          %s193 = sand.u32 %s47, 1
          %s194 = smul.addr %s193, 40
          %s195 = scalar_lea.vmem [#allocation2], %s194
          %s196 = sadd.s32 %s30, %s31
          %s198 = ssub.s32 640, 640
          %199 = vsyncadd %s192, %s198
          %s200 = smul.addr %s196, 128
          %s201 = scalar_lea.hbm %s0, %s200
          %s202 = sshll.u32 %s195, 4
          %s203 = int_to_ptr.vmem [resolvable:$true] %s202
          %208 = dma.hbm_to_vmem [thread:$0]  %s201, 640, %s203, %s192, 256, 128, 8
        $region20: #{tpu_custom_call.1} parent=15 // pred_fallthru
          _
        // Predicated region
        $region21: #{tpu_custom_call.1} parent=15 // pred_check
          %p209 = pneg %p85
        $region22: #{tpu_custom_call.1} parent=15 // pred_check_branch
          %211 = sbr.rel (%p209) target = $region24
        $region23: #{tpu_custom_call.1} parent=15 // pred_region
          %s212 = sand.u32 %s75, 1
          %s213 = scalar_lea.sflag [#allocation6], %s212
          %s214 = sand.u32 %s75, 1
          %s215 = smul.addr %s214, 8
          %s216 = scalar_lea.vmem [#allocation5], %s215
          %s217 = sadd.s32 %s30, %s31
          %s219 = ssub.s32 128, 128
          %220 = vsyncadd %s213, %s219
          %s221 = smul.addr %s217, 128
          %s222 = scalar_lea.hbm %s1, %s221
          %s224 = sshll.u32 %s216, 4
          %s225 = int_to_ptr.vmem [resolvable:$true] %s224
          %227 = dma.hbm_to_vmem [thread:$0]  %s222, 128, %s225, %s213
        $region24: #{tpu_custom_call.1} parent=15 // pred_fallthru
          _
      $region16: #{tpu_custom_call.1} parent=5 // pred_fallthru
        _
      %p228 = scmp.le.s32.totalorder 1, %s23
      %p229 = scmp.lt.s32.totalorder %s23, 3
      %p230 = pnand %p228, %p229
      %p231 = pneg %p230
      // Predicated region
      $region25: #{tpu_custom_call.1} parent=5 // pred_check
        _
      $region26: #{tpu_custom_call.1} parent=5 // pred_check_branch
        %233 = sbr.rel (%p230) target = $region28
      $region27: #{tpu_custom_call.1} parent=5 // pred_region
        %s234 = ssub.s32 %s23, 1
        %s235 = sand.u32 %s50, 1
        %s236 = scalar_lea.sflag [#allocation3], %s235
        %s237 = sand.u32 %s50, 1
        %s238 = smul.addr %s237, 40
        %s239 = scalar_lea.vmem [#allocation2], %s238
        // Predicated region
        $region29: #{tpu_custom_call.1} parent=27 // pred_check
          %p240 = pneg %p63
        $region30: #{tpu_custom_call.1} parent=27 // pred_check_branch
          %242 = sbr.rel (%p240) target = $region32
        $region31: #{tpu_custom_call.1} parent=27 // pred_region
          %243 = dma.done %s236, 640
        $region32: #{tpu_custom_call.1} parent=27 // pred_fallthru
          _
        %s244 = sand.u32 %s78, 1
        %s245 = scalar_lea.sflag [#allocation6], %s244
        %s246 = sand.u32 %s78, 1
        %s247 = smul.addr %s246, 8
        %s248 = scalar_lea.vmem [#allocation5], %s247
        // Predicated region
        $region33: #{tpu_custom_call.1} parent=27 // pred_check
          %p249 = pneg %p91
        $region34: #{tpu_custom_call.1} parent=27 // pred_check_branch
          %251 = sbr.rel (%p249) target = $region36
        $region35: #{tpu_custom_call.1} parent=27 // pred_region
          %252 = dma.done %s245, 128
        $region36: #{tpu_custom_call.1} parent=27 // pred_fallthru
          _
        %s253 = sand.u32 %s50, 1
        %s254 = scalar_lea.sflag [#allocation3], %s253
        %s255 = sand.u32 %s50, 1
        %s256 = smul.addr %s255, 40
        %s257 = scalar_lea.vmem [#allocation2], %s256
        %p258 = pneg %p63
        %p259 = pneg %p60
        %s260 = sand.u32 %s78, 1
        %s261 = scalar_lea.sflag [#allocation6], %s260
        %s262 = sand.u32 %s78, 1
        %s263 = smul.addr %s262, 8
        %s264 = scalar_lea.vmem [#allocation5], %s263
        %p265 = pneg %p91
        %p266 = pneg %p88
        %p267 = pneg %p117
        %p268 = pneg %p114
        %s269 = sand.u32 %s104, 1
        %s270 = scalar_lea.sflag [#allocation4], %s269
        %s271 = sand.u32 %s104, 1
        %s272 = smul.addr %s271, 8
        %s273 = scalar_lea.vmem [#allocation7], %s272
        %p274 = pneg %p143
        %p275 = pneg %p140
        %s276 = sand.u32 %s28, 1
        %s277 = scalar_lea.sflag [#allocation9], %s276
        %s278 = sand.u32 %s130, 1
        %s279 = smul.addr %s278, 8
        %s280 = scalar_lea.vmem [#allocation8], %s279
        %p281 = pneg %p169
        %p282 = pneg %p166
        %s283 = sand.u32 %s28, 1
        %s284 = scalar_lea.sflag [#allocation9], %s283
        %s285 = sand.u32 %s156, 1
        %s286 = smul.addr %s285, 8
        %s287 = scalar_lea.vmem [#allocation10], %s286
        %s288 = sadd.s32 %s32, %s33
        %s289 = sadd.s32 %s32, %s33
        %p290 = scmp.eq.s32.totalorder %s33, 0
        // Predicated region
        $region37: #{tpu_custom_call.1} parent=27 // pred_check
          %p291 = pneg %p290
        $region38: #{tpu_custom_call.1} parent=27 // pred_check_branch
          %293 = sbr.rel (%p291) target = $region40
        $region39: #{tpu_custom_call.1} parent=27 // pred_region
          %294 = vst [vmem:[%s273] sm:$0xff] 0.0
          %295 = vst [vmem:[%s280] sm:$0xff] 0.0
          %296 = vst [vmem:[%s287] sm:$0xff] 0.0
        $region40: #{tpu_custom_call.1} parent=27 // pred_fallthru
          _
        %v297 = vld [vmem:[%s239] sm:$0xff]
        %s298 = scalar_lea.vmem %s239, 8 [#allocation2]
        %v299 = vld [vmem:[%s298] sm:$0xff]
        %vm300 = vcmp.gt.f32.partialorder %v299, %v297
        %v301 = vsel %vm300, %v299, %v297
        %v302 = vsel %vm300, 1, 0
        %s303 = scalar_lea.vmem %s239, 16 [#allocation2]
        %v304 = vld [vmem:[%s303] sm:$0xff]
        %vm305 = vcmp.gt.f32.partialorder %v304, %v301
        %v306 = vsel %vm305, %v304, %v301
        %v307 = vsel %vm305, 2, %v302
        %s308 = scalar_lea.vmem %s239, 24 [#allocation2]
        %v309 = vld [vmem:[%s308] sm:$0xff]
        %vm310 = vcmp.gt.f32.partialorder %v309, %v306
        %v311 = vsel %vm310, %v309, %v306
        %v312 = vsel %vm310, 3, %v307
        %s313 = scalar_lea.vmem %s239, 32 [#allocation2]
        %v314 = vld [vmem:[%s313] sm:$0xff]
        %vm315 = vcmp.gt.f32.partialorder %v314, %v311
        %v316 = vsel %vm315, 4, %v312
        %v317 = vld [vmem:[%s248] sm:$0xff]
        %vm318 = vcmp.ge.s32.totalorder %v316, 1
        %v319 = vsel %vm318, 1.0, 0.0
        %vm320 = vcmp.ge.s32.totalorder %v317, 1
        %v321 = vsel %vm320, 1.0, 0.0
        %vm322 = vcmp.eq.s32.totalorder %v316, %v317
        %v323 = vsel %vm322, %v321, 0.0
        %v324 = vld [vmem:[%s273] sm:$0xff]
        %v325 = vadd.f32 %v323, 0.0
        %v326 = vadd.f32 %v324, %v325
        %327 = vst [vmem:[%s273] sm:$0xff] %v326
        %v328 = vld [vmem:[%s280] sm:$0xff]
        %v329 = vadd.f32 %v321, 0.0
        %v330 = vadd.f32 %v328, %v329
        %331 = vst [vmem:[%s280] sm:$0xff] %v330
        %v332 = vld [vmem:[%s287] sm:$0xff]
        %v333 = vadd.f32 %v319, 0.0
        %v334 = vadd.f32 %v332, %v333
        %335 = vst [vmem:[%s287] sm:$0xff] %v334
        %s336 = sand.u32 %s104, 1
        %s337 = scalar_lea.sflag [#allocation4], %s336
        %s338 = sand.u32 %s104, 1
        %s339 = smul.addr %s338, 8
        %s340 = scalar_lea.vmem [#allocation7], %s339
        %s341 = sand.u32 %s28, 1
        %s342 = scalar_lea.sflag [#allocation9], %s341
        %s343 = sand.u32 %s130, 1
        %s344 = smul.addr %s343, 8
        %s345 = scalar_lea.vmem [#allocation8], %s344
        %s346 = sand.u32 %s28, 1
        %s347 = scalar_lea.sflag [#allocation9], %s346
        %s348 = sand.u32 %s156, 1
        %s349 = smul.addr %s348, 8
        %s350 = scalar_lea.vmem [#allocation10], %s349
        // Predicated region
        $region41: #{tpu_custom_call.1} parent=27 // pred_check
          %p351 = pneg %p114
        $region42: #{tpu_custom_call.1} parent=27 // pred_check_branch
          %353 = sbr.rel (%p351) target = $region44
        $region43: #{tpu_custom_call.1} parent=27 // pred_region
          %s355 = ssub.s32 128, 128
          %356 = vsyncadd %s337, %s355
          %s357 = smul.addr %s32, 128
          %s358 = scalar_lea.hbm %s2, %s357
          %s360 = sshll.u32 %s340, 4
          %s361 = int_to_ptr.vmem [resolvable:$true] %s360
          %363 = dma.vmem_to_hbm [thread:$0]  %s361, 128, %s358, %s337
        $region44: #{tpu_custom_call.1} parent=27 // pred_fallthru
          _
        // Predicated region
        $region45: #{tpu_custom_call.1} parent=27 // pred_check
          %p364 = pneg %p140
        $region46: #{tpu_custom_call.1} parent=27 // pred_check_branch
          %366 = sbr.rel (%p364) target = $region48
        $region47: #{tpu_custom_call.1} parent=27 // pred_region
          %s368 = ssub.s32 128, 128
          %369 = vsyncadd %s342, %s368
          %s370 = smul.addr %s32, 128
          %s371 = scalar_lea.hbm %s3, %s370
          %s373 = sshll.u32 %s345, 4
          %s374 = int_to_ptr.vmem [resolvable:$true] %s373
          %376 = dma.vmem_to_hbm [thread:$0]  %s374, 128, %s371, %s342
        $region48: #{tpu_custom_call.1} parent=27 // pred_fallthru
          _
        // Predicated region
        $region49: #{tpu_custom_call.1} parent=27 // pred_check
          %p377 = pneg %p166
        $region50: #{tpu_custom_call.1} parent=27 // pred_check_branch
          %379 = sbr.rel (%p377) target = $region52
        $region51: #{tpu_custom_call.1} parent=27 // pred_region
          %s381 = ssub.s32 128, 128
          %382 = vsyncadd %s347, %s381
          %s383 = smul.addr %s32, 128
          %s384 = scalar_lea.hbm %s4, %s383
          %s386 = sshll.u32 %s350, 4
          %s387 = int_to_ptr.vmem [resolvable:$true] %s386
          %389 = dma.vmem_to_hbm [thread:$0]  %s387, 128, %s384, %s347
        $region52: #{tpu_custom_call.1} parent=27 // pred_fallthru
          _
      $region28: #{tpu_custom_call.1} parent=5 // pred_fallthru
        _
      %p390 = scmp.le.s32.totalorder 2, %s23
      // Predicated region
      $region53: #{tpu_custom_call.1} parent=5 // pred_check
        %p391 = pneg %p390
      $region54: #{tpu_custom_call.1} parent=5 // pred_check_branch
        %393 = sbr.rel (%p391) target = $region56
      $region55: #{tpu_custom_call.1} parent=5 // pred_region
        %s394 = ssub.s32 %s23, 2
        // Predicated region
        $region57: #{tpu_custom_call.1} parent=55 // pred_check
          %p395 = pneg %p120
        $region58: #{tpu_custom_call.1} parent=55 // pred_check_branch
          %397 = sbr.rel (%p395) target = $region60
        $region59: #{tpu_custom_call.1} parent=55 // pred_region
          %s398 = sand.u32 %s105, 1
          %s399 = scalar_lea.sflag [#allocation4], %s398
          %s400 = sand.u32 %s105, 1
          %s401 = smul.addr %s400, 8
          %s402 = scalar_lea.vmem [#allocation7], %s401
          %403 = dma.done %s399, 128
        $region60: #{tpu_custom_call.1} parent=55 // pred_fallthru
          _
        // Predicated region
        $region61: #{tpu_custom_call.1} parent=55 // pred_check
          %p404 = pneg %p146
        $region62: #{tpu_custom_call.1} parent=55 // pred_check_branch
          %406 = sbr.rel (%p404) target = $region64
        $region63: #{tpu_custom_call.1} parent=55 // pred_region
          %s407 = sand.u32 %s29, 1
          %s408 = scalar_lea.sflag [#allocation9], %s407
          %s409 = sand.u32 %s131, 1
          %s410 = smul.addr %s409, 8
          %s411 = scalar_lea.vmem [#allocation8], %s410
          %412 = dma.done %s408, 128
        $region64: #{tpu_custom_call.1} parent=55 // pred_fallthru
          _
        // Predicated region
        $region65: #{tpu_custom_call.1} parent=55 // pred_check
          %p413 = pneg %p172
        $region66: #{tpu_custom_call.1} parent=55 // pred_check_branch
          %415 = sbr.rel (%p413) target = $region68
        $region67: #{tpu_custom_call.1} parent=55 // pred_region
          %s416 = sand.u32 %s29, 1
          %s417 = scalar_lea.sflag [#allocation9], %s416
          %s418 = sand.u32 %s157, 1
          %s419 = smul.addr %s418, 8
          %s420 = scalar_lea.vmem [#allocation10], %s419
          %421 = dma.done %s417, 128
        $region68: #{tpu_custom_call.1} parent=55 // pred_fallthru
          _
      $region56: #{tpu_custom_call.1} parent=5 // pred_fallthru
        _
    $region6: #{tpu_custom_call.1} parent=1 // loop_footer
      %s27 = sadd.s32 1, %s23
    $region7: #{tpu_custom_call.1} parent=1 // loop_footer_branch
      %22 = sbr.rel target = $region3
    $region8: #{tpu_custom_call.1} parent=1 // loop_exit
      _
    %422 = vsyncpa [#allocation3], 1
    %s423 = scalar_lea.sflag [#allocation3], 1
    %424 = vsyncpa %s423, 1
    %425 = vsyncpa [#allocation6], 1
    %s426 = scalar_lea.sflag [#allocation6], 1
    %427 = vsyncpa %s426, 1
    %428 = vsyncpa [#allocation4], 1
    %s429 = scalar_lea.sflag [#allocation4], 1
    %430 = vsyncpa %s429, 1
    %431 = vsyncpa [#allocation9], 1
    %s432 = scalar_lea.sflag [#allocation9], 1
    %433 = vsyncpa %s432, 1

</llo_original>
